<compile_context>
chip_gen: v5e
topology: v5e:2x2
jax: 0.10.0
libtpu: 0.0.40
codegen_flags: <defaults>
</compile_context>

<pallas_src>
import functools

import jax
import jax.numpy as jnp
import numpy as np
from jax.experimental import pallas as pl
from jax.experimental.pallas import tpu as pltpu


# ----------------------------------------------------------------------------
# Fused Pallas kernel: one graph-propagation layer + running layer-sum update
#   out      = norm_adj @ emb                 (bf16 inputs, f32 accumulate)
#   sum_out  = (sum_in + out) * scale         (f32, scale folds in the 1/(L+1))
# ----------------------------------------------------------------------------
def _prop_mean_kernel(a_ref, b_ref, sum_in_ref, o_ref, sum_out_ref, acc_ref,
                      *, tk, scale):
    k = pl.program_id(1)

    @pl.when(k == 0)
    def _():
        acc_ref[...] = jnp.zeros_like(acc_ref)

    # b_ref holds the full [K, D] embedding table in VMEM (constant index_map);
    # slice the current K-chunk out of it instead of re-DMAing from HBM.
    k_off = pl.multiple_of(k * tk, tk)
    acc_ref[...] += jnp.dot(
        a_ref[...],
        b_ref[pl.ds(k_off, tk), :],
        preferred_element_type=jnp.float32,
    )

    @pl.when(k == pl.num_programs(1) - 1)
    def _():
        out_f32 = acc_ref[...]
        o_ref[...] = out_f32.astype(o_ref.dtype)
        # Running mean accumulator: f32 add, single f32 scale, no downcast.
        sum_out_ref[...] = ((sum_in_ref[...] + out_f32) * scale).astype(
            sum_out_ref.dtype
        )


@functools.partial(jax.jit, static_argnames=("scale", "tm", "tk"))
def propagate_and_accumulate(adj_bf16, emb_bf16, run_sum, *, scale,
                             tm=512, tk=512):
    """One LightGCN layer: (next_emb_bf16, new_running_sum_f32)."""
    M, K = adj_bf16.shape
    K2, D = emb_bf16.shape
    assert K == K2
    tm = min(tm, M)
    tk = min(tk, K)
    # Grid extents use exact division: shapes must tile cleanly (pad upstream
    # for arbitrary graph sizes).
    assert M % tm == 0 and K % tk == 0, "M/K must be multiples of the tile sizes"
    # The embedding operand is held fully VMEM-resident; keep it small enough
    # for every TPU generation (v7x has 64 MiB physical VMEM).
    assert K * D * 2 <= 16 * 1024 * 1024, (
        "embedding table too large for VMEM residency; tile the B operand"
    )

    grid = (M // tm, K // tk)  # reduction axis (k) innermost
    kernel = functools.partial(_prop_mean_kernel, tk=tk, scale=scale)

    out, new_sum = pl.pallas_call(
        kernel,
        out_shape=(
            jax.ShapeDtypeStruct((M, D), emb_bf16.dtype),   # next-layer embedding
            jax.ShapeDtypeStruct((M, D), run_sum.dtype),    # running f32 sum
        ),
        grid_spec=pltpu.PrefetchScalarGridSpec(
            num_scalar_prefetch=0,
            grid=grid,
            in_specs=[
                # Streaming adjacency tiles (the dominant HBM traffic).
                pl.BlockSpec((tm, tk), lambda i, k: (i, k)),
                # Whole embedding table, constant block index -> DMA'd once.
                pl.BlockSpec((K, D), lambda i, k: (0, 0)),
                # Previous running sum for this row tile (constant over k).
                pl.BlockSpec((tm, D), lambda i, k: (i, 0)),
            ],
            out_specs=(
                pl.BlockSpec((tm, D), lambda i, k: (i, 0)),
                pl.BlockSpec((tm, D), lambda i, k: (i, 0)),
            ),
            scratch_shapes=[pltpu.VMEM((tm, D), jnp.float32)],
        ),
        compiler_params=pltpu.CompilerParams(
            dimension_semantics=("parallel", "arbitrary"),
            vmem_limit_bytes=48 * 1024 * 1024,   # > 32 MiB default, < v7x 64 MiB
        ),
        # Accumulate the running sum in place (P8).
        input_output_aliases={2: 1},
    )(adj_bf16, emb_bf16, run_sum)
    return out, new_sum


# ----------------------------------------------------------------------------
# LGCN_Encoder forward (Pallas-backed)
# ----------------------------------------------------------------------------
def lgcn_encoder_forward(user_emb, item_emb, norm_adj_dense, n_layers):
    """Mirrors LGCN_Encoder.forward()."""
    n_users = user_emb.shape[0]
    ego = jnp.concatenate([user_emb, item_emb], axis=0)        # [N, D] f32
    all_embeddings = [ego]

    if n_layers == 0:
        lgcn_all = ego
    else:
        adj_bf16 = norm_adj_dense.astype(jnp.bfloat16)         # cast once, reused L times
        ego_bf16 = ego.astype(jnp.bfloat16)
        run_sum = ego.astype(jnp.float32)                      # layer-0 contribution
        inv_layers = 1.0 / float(n_layers + 1)
        for layer in range(n_layers):
            scale = inv_layers if layer == n_layers - 1 else 1.0
            ego_bf16, run_sum = propagate_and_accumulate(
                adj_bf16, ego_bf16, run_sum, scale=scale
            )
            all_embeddings.append(ego_bf16)
        lgcn_all = run_sum                                     # already the layer mean

    user_all = lgcn_all[:n_users]
    item_all = lgcn_all[n_users:]
    return user_all, item_all, all_embeddings


# ----------------------------------------------------------------------------
# Deterministic parameter / data construction (synthetic, no checkpoint)
# ----------------------------------------------------------------------------
def xavier_uniform(key, shape, dtype=jnp.float32):
    fan_in, fan_out = shape
    bound = float(np.sqrt(6.0 / (fan_in + fan_out)))
    return jax.random.uniform(key, shape, dtype, minval=-bound, maxval=bound)


def build_norm_adj(key, n_users, n_items, density=0.05, dtype=jnp.float32):
    """Symmetric-normalized bipartite interaction graph D^-1/2 A D^-1/2, dense."""
    n = n_users + n_items
    r = jax.random.uniform(key, (n_users, n_items))
    inter = (r < density).astype(dtype)                        # user-item interactions
    a = jnp.zeros((n, n), dtype)
    a = a.at[:n_users, n_users:].set(inter)
    a = a.at[n_users:, :n_users].set(inter.T)
    deg = jnp.sum(a, axis=1)
    d_inv_sqrt = jnp.where(deg > 0, 1.0 / jnp.sqrt(deg), 0.0)
    return (d_inv_sqrt[:, None] * a) * d_inv_sqrt[None, :]


if __name__ == "__main__":
    # Small shapes: n_users + n_items = 256 (two 128 row-tiles), emb_size = 128.
    n_users, n_items = 112, 144
    emb_size = 128
    n_layers = 2

    key = jax.random.PRNGKey(0)
    k_u, k_i, k_a = jax.random.split(key, 3)

    user_emb = xavier_uniform(k_u, (n_users, emb_size))
    item_emb = xavier_uniform(k_i, (n_items, emb_size))
    norm_adj = build_norm_adj(k_a, n_users, n_items)

    user_all, item_all, all_embs = lgcn_encoder_forward(
        user_emb, item_emb, norm_adj, n_layers
    )
    jax.block_until_ready((user_all, item_all, all_embs[-1]))

    # Matched-precision pure-JAX reference (bf16 operands, f32 accumulation).
    ego_ref = jnp.concatenate([user_emb, item_emb], axis=0)
    adj_b = norm_adj.astype(jnp.bfloat16)
    sum_ref = ego_ref.astype(jnp.float32)
    e_b = ego_ref.astype(jnp.bfloat16)
    for _ in range(n_layers):
        nxt = jnp.dot(adj_b, e_b, preferred_element_type=jnp.float32)
        sum_ref = sum_ref + nxt
        e_b = nxt.astype(jnp.bfloat16)
    mean_ref = sum_ref / float(n_layers + 1)

    np.testing.assert_allclose(
        np.asarray(jnp.concatenate([user_all, item_all], axis=0)),
        np.asarray(mean_ref),
        rtol=5e-3, atol=5e-3,
    )

    print("KERNEL_OK")
</pallas_src>

<mosaic_0001>
module attributes {stable_mosaic.version = 11 : i64} {
  func.func @_prop_mean_kernel(%arg0: i32, %arg1: i32, %arg2: memref<256x256xbf16, #tpu.memory_space<vmem>>, %arg3: memref<256x128xbf16, #tpu.memory_space<vmem>>, %arg4: memref<256x128xf32, #tpu.memory_space<vmem>>, %arg5: memref<256x128xbf16, #tpu.memory_space<vmem>>, %arg6: memref<256x128xf32, #tpu.memory_space<vmem>>, %arg7: memref<256x128xf32, #tpu.memory_space<vmem>>) attributes {dimension_semantics = [#tpu.dimension_semantics<parallel>, #tpu.dimension_semantics<arbitrary>], iteration_bounds = array<i64: 1, 1>, scalar_prefetch = 0 : i64, scratch_operands = 1 : i64, tpu.core_type = #tpu.core_type<tc>, window_params = [{transform_indices = @transform_0, window_bounds = array<i64: 256, 256>}, {pipeline_mode = #tpu.pipeline_mode<synchronous>, transform_indices = @transform_1, window_bounds = array<i64: 256, 128>}, {transform_indices = @transform_2, window_bounds = array<i64: 256, 128>}, {transform_indices = @transform_3, window_bounds = array<i64: 256, 128>}, {transform_indices = @transform_4, window_bounds = array<i64: 256, 128>}]} {
    %c0_i32 = arith.constant 0 : i32
    %0 = arith.cmpi eq, %arg1, %c0_i32 : i32
    %1 = arith.extui %0 : i1 to i32
    %c0_i32_0 = arith.constant 0 : i32
    %2 = arith.cmpi ne, %1, %c0_i32_0 : i32
    scf.if %2 {
      %cst_9 = arith.constant 0.000000e+00 : f32
      %15 = vector.broadcast %cst_9 : f32 to vector<256x128xf32>
      %c0_10 = arith.constant 0 : index
      %c0_11 = arith.constant 0 : index
      %16 = vector.load %arg7[%c0_10, %c0_11] : memref<256x128xf32, #tpu.memory_space<vmem>>, vector<256x128xf32>
      tpu.vector_store %arg7[%c0_10, %c0_11], %15 {strides = array<i32>} : memref<256x128xf32, #tpu.memory_space<vmem>>, vector<256x128xf32>,
    } else {
    }
    %c256_i32 = arith.constant 256 : i32
    %3 = arith.muli %arg1, %c256_i32 : i32
    %4 = tpu.assume_multiple %3, 256 : i32
    %c0 = arith.constant 0 : index
    %c0_1 = arith.constant 0 : index
    %5 = vector.load %arg7[%c0, %c0_1] : memref<256x128xf32, #tpu.memory_space<vmem>>, vector<256x128xf32>
    %c0_2 = arith.constant 0 : index
    %c0_3 = arith.constant 0 : index
    %6 = vector.load %arg2[%c0_2, %c0_3] : memref<256x256xbf16, #tpu.memory_space<vmem>>, vector<256x256xbf16>
    %7 = arith.index_cast %4 : i32 to index
    %c0_4 = arith.constant 0 : index
    %8 = vector.load %arg3[%7, %c0_4] : memref<256x128xbf16, #tpu.memory_space<vmem>>, vector<256x128xbf16>
    %cst = arith.constant dense<0.000000e+00> : vector<256x128xf32>
    %9 = tpu.matmul %6, %8, %cst {dimension_numbers = #tpu.dot_dimension_numbers<[1], [0], [0], [1], [0, 0, 1, 1], [], []>} : vector<256x256xbf16>, vector<256x128xbf16>, vector<256x128xf32> -> vector<256x128xf32>
    %10 = arith.addf %5, %9 : vector<256x128xf32>
    %c0_5 = arith.constant 0 : index
    %c0_6 = arith.constant 0 : index
    %11 = vector.load %arg7[%c0_5, %c0_6] : memref<256x128xf32, #tpu.memory_space<vmem>>, vector<256x128xf32>
    tpu.vector_store %arg7[%c0_5, %c0_6], %10 {strides = array<i32>} : memref<256x128xf32, #tpu.memory_space<vmem>>, vector<256x128xf32>,
    %c0_i32_7 = arith.constant 0 : i32
    %12 = arith.cmpi eq, %arg1, %c0_i32_7 : i32
    %13 = arith.extui %12 : i1 to i32
    %c0_i32_8 = arith.constant 0 : i32
    %14 = arith.cmpi ne, %13, %c0_i32_8 : i32
    scf.if %14 {
      %c0_9 = arith.constant 0 : index
      %c0_10 = arith.constant 0 : index
      %15 = vector.load %arg7[%c0_9, %c0_10] : memref<256x128xf32, #tpu.memory_space<vmem>>, vector<256x128xf32>
      %16 = arith.truncf %15 : vector<256x128xf32> to vector<256x128xbf16>
      %c0_11 = arith.constant 0 : index
      %c0_12 = arith.constant 0 : index
      %17 = vector.load %arg5[%c0_11, %c0_12] : memref<256x128xbf16, #tpu.memory_space<vmem>>, vector<256x128xbf16>
      tpu.vector_store %arg5[%c0_11, %c0_12], %16 {strides = array<i32>} : memref<256x128xbf16, #tpu.memory_space<vmem>>, vector<256x128xbf16>,
      %c0_13 = arith.constant 0 : index
      %c0_14 = arith.constant 0 : index
      %18 = vector.load %arg4[%c0_13, %c0_14] : memref<256x128xf32, #tpu.memory_space<vmem>>, vector<256x128xf32>
      %19 = arith.addf %18, %15 : vector<256x128xf32>
      %cst_15 = arith.constant 1.000000e+00 : f32
      %20 = vector.broadcast %cst_15 : f32 to vector<256x128xf32>
      %21 = arith.mulf %19, %20 : vector<256x128xf32>
      %c0_16 = arith.constant 0 : index
      %c0_17 = arith.constant 0 : index
      %22 = vector.load %arg6[%c0_16, %c0_17] : memref<256x128xf32, #tpu.memory_space<vmem>>, vector<256x128xf32>
      tpu.vector_store %arg6[%c0_16, %c0_17], %21 {strides = array<i32>} : memref<256x128xf32, #tpu.memory_space<vmem>>, vector<256x128xf32>,
    } else {
    }
    return
  }
  func.func @transform_0(%arg0: i32, %arg1: i32) -> (i32, i32) {
    %c0_i32 = arith.constant 0 : i32
    return %arg0, %arg1 : i32, i32
  }
  func.func @transform_1(%arg0: i32, %arg1: i32) -> (i32, i32) {
    %c0_i32 = arith.constant 0 : i32
    %c0_i32_0 = arith.constant 0 : i32
    %c0_i32_1 = arith.constant 0 : i32
    return %c0_i32, %c0_i32_0 : i32, i32
  }
  func.func @transform_2(%arg0: i32, %arg1: i32) -> (i32, i32) {
    %c0_i32 = arith.constant 0 : i32
    %c0_i32_0 = arith.constant 0 : i32
    return %arg0, %c0_i32 : i32, i32
  }
  func.func @transform_3(%arg0: i32, %arg1: i32) -> (i32, i32) {
    %c0_i32 = arith.constant 0 : i32
    %c0_i32_0 = arith.constant 0 : i32
    return %arg0, %c0_i32 : i32, i32
  }
  func.func @transform_4(%arg0: i32, %arg1: i32) -> (i32, i32) {
    %c0_i32 = arith.constant 0 : i32
    %c0_i32_0 = arith.constant 0 : i32
    return %arg0, %c0_i32 : i32, i32
  }
}

</mosaic_0001>

<llo_original>
// kernel: propagate_and_accumulate.1
$region0: #{propagate_and_accumulate.1}
  #allocation0 [shape = 'u32[]', space=smem, size = 0x4, offset = 0x4, fixed_abs, tag = 'smem constant byte address 0x4 - core index']
  #allocation1 [shape = 'u32[72,128]{1,0:T(1,128)}', space=vmem, size = 0x9000, scoped, tag = 'internal scratch']
  #allocation2 [shape = 'f32[256,128]{1,0:T(8,128)}', space=vmem, size = 0x20000, scoped, tag = 'scratch operand']
  %s0 = inlined_call_operand.vmem [shape: bf16[256,256], index: 0, kind: input, shape index: {}]
  %s1 = inlined_call_operand.vmem [shape: bf16[256,128], index: 1, kind: input, shape index: {}]
  %s2 = inlined_call_operand.hbm [shape: f32[256,128], index: 2, kind: input, shape index: {}, may-alias: {2,4}]
  %s3 = inlined_call_operand.hbm [shape: bf16[256,128], index: 3, kind: output, shape index: {0}]
  %s4 = inlined_call_operand.hbm [shape: f32[256,128], index: 4, kind: output, shape index: {1}, may-alias: {2,4}]
  %5 = xla_tuple %s3, %s4
  %s6 = sld [smem:[#allocation0]]
  $region42: #{propagate_and_accumulate.1} parent=0
    _
  %s8 = ssub.s32 1, %s6
  %s9 = scalar_select 0, %s8, %s6
  $region1: #{propagate_and_accumulate.1} parent=0
    #allocation3 [shape = 'u8[131072]{0}', space=vmem, size = 0x20000, scoped, tag = 'input window, operand 2, single buffered']
    #allocation4 [shape = 's32[1]{0}', space=sflag, size = 0x4, scoped, tag = 'scoped memory for propagate_and_accumulate.1']
    #allocation5 [shape = 's32[1]{0}', space=sflag, size = 0x4, scoped, tag = 'scoped memory for propagate_and_accumulate.1']
    #allocation6 [shape = 'u8[65536]{0}', space=vmem, size = 0x10000, scoped, tag = 'output window, operand 0, single buffered']
    #allocation7 [shape = 'u8[131072]{0}', space=vmem, size = 0x20000, scoped, tag = 'output window, operand 1, single buffered']
    #allocation8 [shape = 's32[1]{0}', space=sflag, size = 0x4, scoped, tag = 'scoped memory for propagate_and_accumulate.1']
    %10 = vsyncpa [#allocation4], 0
    %11 = vsyncpa [#allocation5], 0
    %12 = vsyncpa [#allocation8], 0
    // Predicated region
    $region2: #{propagate_and_accumulate.1} parent=1 // pred_check
      _
    $region3: #{propagate_and_accumulate.1} parent=1 // pred_check_branch
      %14 = sbr.rel (0) target = $region5
    $region4: #{propagate_and_accumulate.1} parent=1 // pred_region
      _
    $region5: #{propagate_and_accumulate.1} parent=1 // pred_fallthru
      _
    // Predicated region
    $region6: #{propagate_and_accumulate.1} parent=1 // pred_check
      _
    $region7: #{propagate_and_accumulate.1} parent=1 // pred_check_branch
      %16 = sbr.rel (0) target = $region9
    $region8: #{propagate_and_accumulate.1} parent=1 // pred_region
      _
    $region9: #{propagate_and_accumulate.1} parent=1 // pred_fallthru
      _
    // Predicated region
    $region10: #{propagate_and_accumulate.1} parent=1 // pred_check
      _
    $region11: #{propagate_and_accumulate.1} parent=1 // pred_check_branch
      %18 = sbr.rel (0) target = $region13
    $region12: #{propagate_and_accumulate.1} parent=1 // pred_region
      %20 = vsyncadd [#allocation4], 0
      %s21 = sshll.u32 %s2, 4
      %s22 = int_to_ptr.hbm [resolvable:$true] %s21
      %s23 = sshll.u32 [#allocation3], 4
      %s24 = int_to_ptr.vmem [resolvable:$true] %s23
      %29 = dma.hbm_to_vmem [thread:$0]  %s22, 4096, %s24, [#allocation4], 128, 128, 8
    $region13: #{propagate_and_accumulate.1} parent=1 // pred_fallthru
      _
    // Predicated region
    $region14: #{propagate_and_accumulate.1} parent=1 // pred_check
      _
    $region15: #{propagate_and_accumulate.1} parent=1 // pred_check_branch
      %31 = sbr.rel (0) target = $region17
    $region16: #{propagate_and_accumulate.1} parent=1 // pred_region
      %33 = dma.done [#allocation4], 4096
    $region17: #{propagate_and_accumulate.1} parent=1 // pred_fallthru
      _
    %p34 = scmp.eq.s32.totalorder 0, 0
    // Predicated region
    $region18: #{propagate_and_accumulate.1} parent=1 // pred_check
      %p35 = pneg %p34
    $region19: #{propagate_and_accumulate.1} parent=1 // pred_check_branch
      %37 = sbr.rel (%p35) target = $region21
    $region20: #{propagate_and_accumulate.1} parent=1 // pred_region
      %38 = vst [vmem:[#allocation2] sm:$0xff] 0.0
      %39 = vst [vmem:[#allocation2 + $0x8] sm:$0xff] 0.0
      %40 = vst [vmem:[#allocation2 + $0x10] sm:$0xff] 0.0
      %41 = vst [vmem:[#allocation2 + $0x18] sm:$0xff] 0.0
      %42 = vst [vmem:[#allocation2 + $0x20] sm:$0xff] 0.0
      %43 = vst [vmem:[#allocation2 + $0x28] sm:$0xff] 0.0
      %44 = vst [vmem:[#allocation2 + $0x30] sm:$0xff] 0.0
      %45 = vst [vmem:[#allocation2 + $0x38] sm:$0xff] 0.0
      %46 = vst [vmem:[#allocation2 + $0x40] sm:$0xff] 0.0
      %47 = vst [vmem:[#allocation2 + $0x48] sm:$0xff] 0.0
      %48 = vst [vmem:[#allocation2 + $0x50] sm:$0xff] 0.0
      %49 = vst [vmem:[#allocation2 + $0x58] sm:$0xff] 0.0
      %50 = vst [vmem:[#allocation2 + $0x60] sm:$0xff] 0.0
      %51 = vst [vmem:[#allocation2 + $0x68] sm:$0xff] 0.0
      %52 = vst [vmem:[#allocation2 + $0x70] sm:$0xff] 0.0
      %53 = vst [vmem:[#allocation2 + $0x78] sm:$0xff] 0.0
      %54 = vst [vmem:[#allocation2 + $0x80] sm:$0xff] 0.0
      %55 = vst [vmem:[#allocation2 + $0x88] sm:$0xff] 0.0
      %56 = vst [vmem:[#allocation2 + $0x90] sm:$0xff] 0.0
      %57 = vst [vmem:[#allocation2 + $0x98] sm:$0xff] 0.0
      %58 = vst [vmem:[#allocation2 + $0xa0] sm:$0xff] 0.0
      %59 = vst [vmem:[#allocation2 + $0xa8] sm:$0xff] 0.0
      %60 = vst [vmem:[#allocation2 + $0xb0] sm:$0xff] 0.0
      %61 = vst [vmem:[#allocation2 + $0xb8] sm:$0xff] 0.0
      %62 = vst [vmem:[#allocation2 + $0xc0] sm:$0xff] 0.0
      %63 = vst [vmem:[#allocation2 + $0xc8] sm:$0xff] 0.0
      %64 = vst [vmem:[#allocation2 + $0xd0] sm:$0xff] 0.0
      %65 = vst [vmem:[#allocation2 + $0xd8] sm:$0xff] 0.0
      %66 = vst [vmem:[#allocation2 + $0xe0] sm:$0xff] 0.0
      %67 = vst [vmem:[#allocation2 + $0xe8] sm:$0xff] 0.0
      %68 = vst [vmem:[#allocation2 + $0xf0] sm:$0xff] 0.0
      %69 = vst [vmem:[#allocation2 + $0xf8] sm:$0xff] 0.0
    $region21: #{propagate_and_accumulate.1} parent=1 // pred_fallthru
      _
    %s70 = smul.u32 0, 256
    %v71 = vld [vmem:[#allocation2] sm:$0xff]
    %v72 = vld [vmem:[#allocation2 + $0x8] sm:$0xff]
    %v73 = vld [vmem:[#allocation2 + $0x10] sm:$0xff]
    %v74 = vld [vmem:[#allocation2 + $0x18] sm:$0xff]
    %v75 = vld [vmem:[#allocation2 + $0x20] sm:$0xff]
    %v76 = vld [vmem:[#allocation2 + $0x28] sm:$0xff]
    %v77 = vld [vmem:[#allocation2 + $0x30] sm:$0xff]
    %v78 = vld [vmem:[#allocation2 + $0x38] sm:$0xff]
    %v79 = vld [vmem:[#allocation2 + $0x40] sm:$0xff]
    %v80 = vld [vmem:[#allocation2 + $0x48] sm:$0xff]
    %v81 = vld [vmem:[#allocation2 + $0x50] sm:$0xff]
    %v82 = vld [vmem:[#allocation2 + $0x58] sm:$0xff]
    %v83 = vld [vmem:[#allocation2 + $0x60] sm:$0xff]
    %v84 = vld [vmem:[#allocation2 + $0x68] sm:$0xff]
    %v85 = vld [vmem:[#allocation2 + $0x70] sm:$0xff]
    %v86 = vld [vmem:[#allocation2 + $0x78] sm:$0xff]
    %v87 = vld [vmem:[#allocation2 + $0x80] sm:$0xff]
    %v88 = vld [vmem:[#allocation2 + $0x88] sm:$0xff]
    %v89 = vld [vmem:[#allocation2 + $0x90] sm:$0xff]
    %v90 = vld [vmem:[#allocation2 + $0x98] sm:$0xff]
    %v91 = vld [vmem:[#allocation2 + $0xa0] sm:$0xff]
    %v92 = vld [vmem:[#allocation2 + $0xa8] sm:$0xff]
    %v93 = vld [vmem:[#allocation2 + $0xb0] sm:$0xff]
    %v94 = vld [vmem:[#allocation2 + $0xb8] sm:$0xff]
    %v95 = vld [vmem:[#allocation2 + $0xc0] sm:$0xff]
    %v96 = vld [vmem:[#allocation2 + $0xc8] sm:$0xff]
    %v97 = vld [vmem:[#allocation2 + $0xd0] sm:$0xff]
    %v98 = vld [vmem:[#allocation2 + $0xd8] sm:$0xff]
    %v99 = vld [vmem:[#allocation2 + $0xe0] sm:$0xff]
    %v100 = vld [vmem:[#allocation2 + $0xe8] sm:$0xff]
    %v101 = vld [vmem:[#allocation2 + $0xf0] sm:$0xff]
    %v102 = vld [vmem:[#allocation2 + $0xf8] sm:$0xff]
    %v103 = vld [vmem:[%s0] sm:$0xff]
    %v104 = vld [vmem:[%s0 + $0x8] sm:$0xff]
    %v105 = vld [vmem:[%s0 + $0x10] sm:$0xff]
    %v106 = vld [vmem:[%s0 + $0x18] sm:$0xff]
    %v107 = vld [vmem:[%s0 + $0x20] sm:$0xff]
    %v108 = vld [vmem:[%s0 + $0x28] sm:$0xff]
    %v109 = vld [vmem:[%s0 + $0x30] sm:$0xff]
    %v110 = vld [vmem:[%s0 + $0x38] sm:$0xff]
    %v111 = vld [vmem:[%s0 + $0x40] sm:$0xff]
    %v112 = vld [vmem:[%s0 + $0x48] sm:$0xff]
    %v113 = vld [vmem:[%s0 + $0x50] sm:$0xff]
    %v114 = vld [vmem:[%s0 + $0x58] sm:$0xff]
    %v115 = vld [vmem:[%s0 + $0x60] sm:$0xff]
    %v116 = vld [vmem:[%s0 + $0x68] sm:$0xff]
    %v117 = vld [vmem:[%s0 + $0x70] sm:$0xff]
    %v118 = vld [vmem:[%s0 + $0x78] sm:$0xff]
    %v119 = vld [vmem:[%s0 + $0x80] sm:$0xff]
    %v120 = vld [vmem:[%s0 + $0x88] sm:$0xff]
    %v121 = vld [vmem:[%s0 + $0x90] sm:$0xff]
    %v122 = vld [vmem:[%s0 + $0x98] sm:$0xff]
    %v123 = vld [vmem:[%s0 + $0xa0] sm:$0xff]
    %v124 = vld [vmem:[%s0 + $0xa8] sm:$0xff]
    %v125 = vld [vmem:[%s0 + $0xb0] sm:$0xff]
    %v126 = vld [vmem:[%s0 + $0xb8] sm:$0xff]
    %v127 = vld [vmem:[%s0 + $0xc0] sm:$0xff]
    %v128 = vld [vmem:[%s0 + $0xc8] sm:$0xff]
    %v129 = vld [vmem:[%s0 + $0xd0] sm:$0xff]
    %v130 = vld [vmem:[%s0 + $0xd8] sm:$0xff]
    %v131 = vld [vmem:[%s0 + $0xe0] sm:$0xff]
    %v132 = vld [vmem:[%s0 + $0xe8] sm:$0xff]
    %v133 = vld [vmem:[%s0 + $0xf0] sm:$0xff]
    %v134 = vld [vmem:[%s0 + $0xf8] sm:$0xff]
    %s135 = sshra.s32 %s70, 3
    %s136 = sand.u32 %s70, 7
    %s137 = smul.addr %s135, 4
    %s138 = scalar_lea.vmem %s1, %s137
    %v139 = vld [vmem:[%s138] sm:$0xf]
    %v140 = vld [vmem:[%s138 + $0x4] sm:$0xf]
    %v141 = vld [vmem:[%s138 + $0x8] sm:$0xf]
    %v142 = vld [vmem:[%s138 + $0xc] sm:$0xf]
    %v143 = vld [vmem:[%s138 + $0x10] sm:$0xf]
    %v144 = vld [vmem:[%s138 + $0x14] sm:$0xf]
    %v145 = vld [vmem:[%s138 + $0x18] sm:$0xf]
    %v146 = vld [vmem:[%s138 + $0x1c] sm:$0xf]
    %v147 = vld [vmem:[%s138 + $0x20] sm:$0xf]
    %v148 = vld [vmem:[%s138 + $0x24] sm:$0xf]
    %v149 = vld [vmem:[%s138 + $0x28] sm:$0xf]
    %v150 = vld [vmem:[%s138 + $0x2c] sm:$0xf]
    %v151 = vld [vmem:[%s138 + $0x30] sm:$0xf]
    %v152 = vld [vmem:[%s138 + $0x34] sm:$0xf]
    %v153 = vld [vmem:[%s138 + $0x38] sm:$0xf]
    %v154 = vld [vmem:[%s138 + $0x3c] sm:$0xf]
    %v155 = vld [vmem:[%s138 + $0x40] sm:$0xf]
    %v156 = vld [vmem:[%s138 + $0x44] sm:$0xf]
    %v157 = vld [vmem:[%s138 + $0x48] sm:$0xf]
    %v158 = vld [vmem:[%s138 + $0x4c] sm:$0xf]
    %v159 = vld [vmem:[%s138 + $0x50] sm:$0xf]
    %v160 = vld [vmem:[%s138 + $0x54] sm:$0xf]
    %v161 = vld [vmem:[%s138 + $0x58] sm:$0xf]
    %v162 = vld [vmem:[%s138 + $0x5c] sm:$0xf]
    %v163 = vld [vmem:[%s138 + $0x60] sm:$0xf]
    %v164 = vld [vmem:[%s138 + $0x64] sm:$0xf]
    %v165 = vld [vmem:[%s138 + $0x68] sm:$0xf]
    %v166 = vld [vmem:[%s138 + $0x6c] sm:$0xf]
    %v167 = vld [vmem:[%s138 + $0x70] sm:$0xf]
    %v168 = vld [vmem:[%s138 + $0x74] sm:$0xf]
    %v169 = vld [vmem:[%s138 + $0x78] sm:$0xf]
    %v170 = vld [vmem:[%s138 + $0x7c] sm:$0xf]
    %v203 = vunpack.c.l.b16 %v103
    %v204 = vunpack.c.h.b16 %v103
    %v205 = vunpack.c.l.b16 %v104
    %v206 = vunpack.c.h.b16 %v104
    %v207 = vunpack.c.l.b16 %v105
    %v208 = vunpack.c.h.b16 %v105
    %v209 = vunpack.c.l.b16 %v106
    %v210 = vunpack.c.h.b16 %v106
    %v211 = vunpack.c.l.b16 %v107
    %v212 = vunpack.c.h.b16 %v107
    %v213 = vunpack.c.l.b16 %v108
    %v214 = vunpack.c.h.b16 %v108
    %v215 = vunpack.c.l.b16 %v109
    %v216 = vunpack.c.h.b16 %v109
    %v217 = vunpack.c.l.b16 %v110
    %v218 = vunpack.c.h.b16 %v110
    %v219 = vunpack.c.l.b16 %v111
    %v220 = vunpack.c.h.b16 %v111
    %v221 = vunpack.c.l.b16 %v112
    %v222 = vunpack.c.h.b16 %v112
    %v223 = vunpack.c.l.b16 %v113
    %v224 = vunpack.c.h.b16 %v113
    %v225 = vunpack.c.l.b16 %v114
    %v226 = vunpack.c.h.b16 %v114
    %v227 = vunpack.c.l.b16 %v115
    %v228 = vunpack.c.h.b16 %v115
    %v229 = vunpack.c.l.b16 %v116
    %v230 = vunpack.c.h.b16 %v116
    %v231 = vunpack.c.l.b16 %v117
    %v232 = vunpack.c.h.b16 %v117
    %v233 = vunpack.c.l.b16 %v118
    %v234 = vunpack.c.h.b16 %v118
    %v235 = vunpack.c.l.b16 %v119
    %v236 = vunpack.c.h.b16 %v119
    %v237 = vunpack.c.l.b16 %v120
    %v238 = vunpack.c.h.b16 %v120
    %v239 = vunpack.c.l.b16 %v121
    %v240 = vunpack.c.h.b16 %v121
    %v241 = vunpack.c.l.b16 %v122
    %v242 = vunpack.c.h.b16 %v122
    %v243 = vunpack.c.l.b16 %v123
    %v244 = vunpack.c.h.b16 %v123
    %v245 = vunpack.c.l.b16 %v124
    %v246 = vunpack.c.h.b16 %v124
    %v247 = vunpack.c.l.b16 %v125
    %v248 = vunpack.c.h.b16 %v125
    %v249 = vunpack.c.l.b16 %v126
    %v250 = vunpack.c.h.b16 %v126
    %v251 = vunpack.c.l.b16 %v127
    %v252 = vunpack.c.h.b16 %v127
    %v253 = vunpack.c.l.b16 %v128
    %v254 = vunpack.c.h.b16 %v128
    %v255 = vunpack.c.l.b16 %v129
    %v256 = vunpack.c.h.b16 %v129
    %v257 = vunpack.c.l.b16 %v130
    %v258 = vunpack.c.h.b16 %v130
    %v259 = vunpack.c.l.b16 %v131
    %v260 = vunpack.c.h.b16 %v131
    %v261 = vunpack.c.l.b16 %v132
    %v262 = vunpack.c.h.b16 %v132
    %v263 = vunpack.c.l.b16 %v133
    %v264 = vunpack.c.h.b16 %v133
    %v265 = vunpack.c.l.b16 %v134
    %v266 = vunpack.c.h.b16 %v134
    %v267 = vpack.c.b16 %v205, %v203
    %v268 = vpack.c.b16 %v206, %v204
    %v269 = vpack.c.b16 %v209, %v207
    %v270 = vpack.c.b16 %v210, %v208
    %v271 = vpack.c.b16 %v213, %v211
    %v272 = vpack.c.b16 %v214, %v212
    %v273 = vpack.c.b16 %v217, %v215
    %v274 = vpack.c.b16 %v218, %v216
    %v275 = vpack.c.b16 %v221, %v219
    %v276 = vpack.c.b16 %v222, %v220
    %v277 = vpack.c.b16 %v225, %v223
    %v278 = vpack.c.b16 %v226, %v224
    %v279 = vpack.c.b16 %v229, %v227
    %v280 = vpack.c.b16 %v230, %v228
    %v281 = vpack.c.b16 %v233, %v231
    %v282 = vpack.c.b16 %v234, %v232
    %v283 = vpack.c.b16 %v237, %v235
    %v284 = vpack.c.b16 %v238, %v236
    %v285 = vpack.c.b16 %v241, %v239
    %v286 = vpack.c.b16 %v242, %v240
    %v287 = vpack.c.b16 %v245, %v243
    %v288 = vpack.c.b16 %v246, %v244
    %v289 = vpack.c.b16 %v249, %v247
    %v290 = vpack.c.b16 %v250, %v248
    %v291 = vpack.c.b16 %v253, %v251
    %v292 = vpack.c.b16 %v254, %v252
    %v293 = vpack.c.b16 %v257, %v255
    %v294 = vpack.c.b16 %v258, %v256
    %v295 = vpack.c.b16 %v261, %v259
    %v296 = vpack.c.b16 %v262, %v260
    %v297 = vpack.c.b16 %v265, %v263
    %v298 = vpack.c.b16 %v266, %v264
    %v363 = vunpack.c.l.b16 %v139
    %v364 = vunpack.c.l.b16 %v140
    %v365 = vunpack.c.l.b16 %v141
    %v366 = vunpack.c.l.b16 %v142
    %v367 = vunpack.c.l.b16 %v143
    %v368 = vunpack.c.l.b16 %v144
    %v369 = vunpack.c.l.b16 %v145
    %v370 = vunpack.c.l.b16 %v146
    %v371 = vunpack.c.l.b16 %v147
    %v372 = vunpack.c.l.b16 %v148
    %v373 = vunpack.c.l.b16 %v149
    %v374 = vunpack.c.l.b16 %v150
    %v375 = vunpack.c.l.b16 %v151
    %v376 = vunpack.c.l.b16 %v152
    %v377 = vunpack.c.l.b16 %v153
    %v378 = vunpack.c.l.b16 %v154
    %v379 = vunpack.c.l.b16 %v155
    %v380 = vunpack.c.l.b16 %v156
    %v381 = vunpack.c.l.b16 %v157
    %v382 = vunpack.c.l.b16 %v158
    %v383 = vunpack.c.l.b16 %v159
    %v384 = vunpack.c.l.b16 %v160
    %v385 = vunpack.c.l.b16 %v161
    %v386 = vunpack.c.l.b16 %v162
    %v387 = vunpack.c.l.b16 %v163
    %v388 = vunpack.c.l.b16 %v164
    %v389 = vunpack.c.l.b16 %v165
    %v390 = vunpack.c.l.b16 %v166
    %v391 = vunpack.c.l.b16 %v167
    %v392 = vunpack.c.l.b16 %v168
    %v393 = vunpack.c.l.b16 %v169
    %v394 = vunpack.c.l.b16 %v170
    %v395 = vpack.c.b16 %v364, %v363
    %v396 = vpack.c.b16 %v366, %v365
    %v397 = vpack.c.b16 %v368, %v367
    %v398 = vpack.c.b16 %v370, %v369
    %v399 = vpack.c.b16 %v372, %v371
    %v400 = vpack.c.b16 %v374, %v373
    %v401 = vpack.c.b16 %v376, %v375
    %v402 = vpack.c.b16 %v378, %v377
    %v403 = vpack.c.b16 %v380, %v379
    %v404 = vpack.c.b16 %v382, %v381
    %v405 = vpack.c.b16 %v384, %v383
    %v406 = vpack.c.b16 %v386, %v385
    %v407 = vpack.c.b16 %v388, %v387
    %v408 = vpack.c.b16 %v390, %v389
    %v409 = vpack.c.b16 %v392, %v391
    %v410 = vpack.c.b16 %v394, %v393
    %427 = vmatpush.bf16.msra.mxu0 %v402
    %428 = vmatpush.bf16.msra.mxu0 %v401
    %429 = vmatpush.bf16.msra.mxu0 %v400
    %430 = vmatpush.bf16.msra.mxu0 %v399
    %431 = vmatpush.bf16.msra.mxu0 %v398
    %432 = vmatpush.bf16.msra.mxu0 %v397
    %433 = vmatpush.bf16.msra.mxu0 %v396
    %434 = vmatpush.bf16.msra.mxu0 %v395
    %435 = vmatmul.bf16.gmra.mxu0 %v267
    %v436 = vpop.f32.mrf.mxu0
    %v437 = vadd.f32 0.0, %v436
    %v438 = vpop.f32.mrf.mxu0
    %v439 = vadd.f32 0.0, %v438
    %440 = vmatmul.bf16.gmra.mxu0 %v269
    %v441 = vpop.f32.mrf.mxu0
    %v442 = vadd.f32 0.0, %v441
    %v443 = vpop.f32.mrf.mxu0
    %v444 = vadd.f32 0.0, %v443
    %445 = vmatmul.bf16.gmra.mxu0 %v271
    %v446 = vpop.f32.mrf.mxu0
    %v447 = vadd.f32 0.0, %v446
    %v448 = vpop.f32.mrf.mxu0
    %v449 = vadd.f32 0.0, %v448
    %450 = vmatmul.bf16.gmra.mxu0 %v273
    %v451 = vpop.f32.mrf.mxu0
    %v452 = vadd.f32 0.0, %v451
    %v453 = vpop.f32.mrf.mxu0
    %v454 = vadd.f32 0.0, %v453
    %455 = vmatmul.bf16.gmra.mxu0 %v275
    %v456 = vpop.f32.mrf.mxu0
    %v457 = vadd.f32 0.0, %v456
    %v458 = vpop.f32.mrf.mxu0
    %v459 = vadd.f32 0.0, %v458
    %460 = vmatmul.bf16.gmra.mxu0 %v277
    %v461 = vpop.f32.mrf.mxu0
    %v462 = vadd.f32 0.0, %v461
    %v463 = vpop.f32.mrf.mxu0
    %v464 = vadd.f32 0.0, %v463
    %465 = vmatmul.bf16.gmra.mxu0 %v279
    %v466 = vpop.f32.mrf.mxu0
    %v467 = vadd.f32 0.0, %v466
    %v468 = vpop.f32.mrf.mxu0
    %v469 = vadd.f32 0.0, %v468
    %470 = vmatmul.bf16.gmra.mxu0 %v281
    %v471 = vpop.f32.mrf.mxu0
    %v472 = vadd.f32 0.0, %v471
    %v473 = vpop.f32.mrf.mxu0
    %v474 = vadd.f32 0.0, %v473
    %475 = vmatmul.bf16.gmra.mxu0 %v283
    %v476 = vpop.f32.mrf.mxu0
    %v477 = vadd.f32 0.0, %v476
    %v478 = vpop.f32.mrf.mxu0
    %v479 = vadd.f32 0.0, %v478
    %480 = vmatmul.bf16.gmra.mxu0 %v285
    %v481 = vpop.f32.mrf.mxu0
    %v482 = vadd.f32 0.0, %v481
    %v483 = vpop.f32.mrf.mxu0
    %v484 = vadd.f32 0.0, %v483
    %485 = vmatmul.bf16.gmra.mxu0 %v287
    %v486 = vpop.f32.mrf.mxu0
    %v487 = vadd.f32 0.0, %v486
    %v488 = vpop.f32.mrf.mxu0
    %v489 = vadd.f32 0.0, %v488
    %490 = vmatmul.bf16.gmra.mxu0 %v289
    %v491 = vpop.f32.mrf.mxu0
    %v492 = vadd.f32 0.0, %v491
    %v493 = vpop.f32.mrf.mxu0
    %v494 = vadd.f32 0.0, %v493
    %495 = vmatmul.bf16.gmra.mxu0 %v291
    %v496 = vpop.f32.mrf.mxu0
    %v497 = vadd.f32 0.0, %v496
    %v498 = vpop.f32.mrf.mxu0
    %v499 = vadd.f32 0.0, %v498
    %500 = vmatmul.bf16.gmra.mxu0 %v293
    %v501 = vpop.f32.mrf.mxu0
    %v502 = vadd.f32 0.0, %v501
    %v503 = vpop.f32.mrf.mxu0
    %v504 = vadd.f32 0.0, %v503
    %505 = vmatmul.bf16.gmra.mxu0 %v295
    %v506 = vpop.f32.mrf.mxu0
    %v507 = vadd.f32 0.0, %v506
    %v508 = vpop.f32.mrf.mxu0
    %v509 = vadd.f32 0.0, %v508
    %510 = vmatmul.bf16.gmra.mxu0 %v297
    %v511 = vpop.f32.mrf.mxu0
    %v512 = vadd.f32 0.0, %v511
    %v513 = vpop.f32.mrf.mxu0
    %v514 = vadd.f32 0.0, %v513
    %515 = vdwg.mxu0
    %516 = vmatpush.bf16.msra.mxu0 %v410
    %517 = vmatpush.bf16.msra.mxu0 %v409
    %518 = vmatpush.bf16.msra.mxu0 %v408
    %519 = vmatpush.bf16.msra.mxu0 %v407
    %520 = vmatpush.bf16.msra.mxu0 %v406
    %521 = vmatpush.bf16.msra.mxu0 %v405
    %522 = vmatpush.bf16.msra.mxu0 %v404
    %523 = vmatpush.bf16.msra.mxu0 %v403
    %524 = vmatmul.bf16.gmra.mxu0 %v268
    %v525 = vpop.f32.mrf.mxu0
    %v526 = vadd.f32 %v437, %v525
    %v527 = vpop.f32.mrf.mxu0
    %v528 = vadd.f32 %v439, %v527
    %529 = vmatmul.bf16.gmra.mxu0 %v270
    %v530 = vpop.f32.mrf.mxu0
    %v531 = vadd.f32 %v442, %v530
    %v532 = vpop.f32.mrf.mxu0
    %v533 = vadd.f32 %v444, %v532
    %534 = vmatmul.bf16.gmra.mxu0 %v272
    %v535 = vpop.f32.mrf.mxu0
    %v536 = vadd.f32 %v447, %v535
    %v537 = vpop.f32.mrf.mxu0
    %v538 = vadd.f32 %v449, %v537
    %539 = vmatmul.bf16.gmra.mxu0 %v274
    %v540 = vpop.f32.mrf.mxu0
    %v541 = vadd.f32 %v452, %v540
    %v542 = vpop.f32.mrf.mxu0
    %v543 = vadd.f32 %v454, %v542
    %544 = vmatmul.bf16.gmra.mxu0 %v276
    %v545 = vpop.f32.mrf.mxu0
    %v546 = vadd.f32 %v457, %v545
    %v547 = vpop.f32.mrf.mxu0
    %v548 = vadd.f32 %v459, %v547
    %549 = vmatmul.bf16.gmra.mxu0 %v278
    %v550 = vpop.f32.mrf.mxu0
    %v551 = vadd.f32 %v462, %v550
    %v552 = vpop.f32.mrf.mxu0
    %v553 = vadd.f32 %v464, %v552
    %554 = vmatmul.bf16.gmra.mxu0 %v280
    %v555 = vpop.f32.mrf.mxu0
    %v556 = vadd.f32 %v467, %v555
    %v557 = vpop.f32.mrf.mxu0
    %v558 = vadd.f32 %v469, %v557
    %559 = vmatmul.bf16.gmra.mxu0 %v282
    %v560 = vpop.f32.mrf.mxu0
    %v561 = vadd.f32 %v472, %v560
    %v562 = vpop.f32.mrf.mxu0
    %v563 = vadd.f32 %v474, %v562
    %564 = vmatmul.bf16.gmra.mxu0 %v284
    %v565 = vpop.f32.mrf.mxu0
    %v566 = vadd.f32 %v477, %v565
    %v567 = vpop.f32.mrf.mxu0
    %v568 = vadd.f32 %v479, %v567
    %569 = vmatmul.bf16.gmra.mxu0 %v286
    %v570 = vpop.f32.mrf.mxu0
    %v571 = vadd.f32 %v482, %v570
    %v572 = vpop.f32.mrf.mxu0
    %v573 = vadd.f32 %v484, %v572
    %574 = vmatmul.bf16.gmra.mxu0 %v288
    %v575 = vpop.f32.mrf.mxu0
    %v576 = vadd.f32 %v487, %v575
    %v577 = vpop.f32.mrf.mxu0
    %v578 = vadd.f32 %v489, %v577
    %579 = vmatmul.bf16.gmra.mxu0 %v290
    %v580 = vpop.f32.mrf.mxu0
    %v581 = vadd.f32 %v492, %v580
    %v582 = vpop.f32.mrf.mxu0
    %v583 = vadd.f32 %v494, %v582
    %584 = vmatmul.bf16.gmra.mxu0 %v292
    %v585 = vpop.f32.mrf.mxu0
    %v586 = vadd.f32 %v497, %v585
    %v587 = vpop.f32.mrf.mxu0
    %v588 = vadd.f32 %v499, %v587
    %589 = vmatmul.bf16.gmra.mxu0 %v294
    %v590 = vpop.f32.mrf.mxu0
    %v591 = vadd.f32 %v502, %v590
    %v592 = vpop.f32.mrf.mxu0
    %v593 = vadd.f32 %v504, %v592
    %594 = vmatmul.bf16.gmra.mxu0 %v296
    %v595 = vpop.f32.mrf.mxu0
    %v596 = vadd.f32 %v507, %v595
    %v597 = vpop.f32.mrf.mxu0
    %v598 = vadd.f32 %v509, %v597
    %599 = vmatmul.bf16.gmra.mxu0 %v298
    %v600 = vpop.f32.mrf.mxu0
    %v601 = vadd.f32 %v512, %v600
    %v602 = vpop.f32.mrf.mxu0
    %v603 = vadd.f32 %v514, %v602
    %604 = vdwg.mxu0
    %v605 = vadd.f32 %v71, %v526
    %v606 = vadd.f32 %v72, %v528
    %v607 = vadd.f32 %v73, %v531
    %v608 = vadd.f32 %v74, %v533
    %v609 = vadd.f32 %v75, %v536
    %v610 = vadd.f32 %v76, %v538
    %v611 = vadd.f32 %v77, %v541
    %v612 = vadd.f32 %v78, %v543
    %v613 = vadd.f32 %v79, %v546
    %v614 = vadd.f32 %v80, %v548
    %v615 = vadd.f32 %v81, %v551
    %v616 = vadd.f32 %v82, %v553
    %v617 = vadd.f32 %v83, %v556
    %v618 = vadd.f32 %v84, %v558
    %v619 = vadd.f32 %v85, %v561
    %v620 = vadd.f32 %v86, %v563
    %v621 = vadd.f32 %v87, %v566
    %v622 = vadd.f32 %v88, %v568
    %v623 = vadd.f32 %v89, %v571
    %v624 = vadd.f32 %v90, %v573
    %v625 = vadd.f32 %v91, %v576
    %v626 = vadd.f32 %v92, %v578
    %v627 = vadd.f32 %v93, %v581
    %v628 = vadd.f32 %v94, %v583
    %v629 = vadd.f32 %v95, %v586
    %v630 = vadd.f32 %v96, %v588
    %v631 = vadd.f32 %v97, %v591
    %v632 = vadd.f32 %v98, %v593
    %v633 = vadd.f32 %v99, %v596
    %v634 = vadd.f32 %v100, %v598
    %v635 = vadd.f32 %v101, %v601
    %v636 = vadd.f32 %v102, %v603
    %637 = vst [vmem:[#allocation2] sm:$0xff] %v605
    %638 = vst [vmem:[#allocation2 + $0x8] sm:$0xff] %v606
    %639 = vst [vmem:[#allocation2 + $0x10] sm:$0xff] %v607
    %640 = vst [vmem:[#allocation2 + $0x18] sm:$0xff] %v608
    %641 = vst [vmem:[#allocation2 + $0x20] sm:$0xff] %v609
    %642 = vst [vmem:[#allocation2 + $0x28] sm:$0xff] %v610
    %643 = vst [vmem:[#allocation2 + $0x30] sm:$0xff] %v611
    %644 = vst [vmem:[#allocation2 + $0x38] sm:$0xff] %v612
    %645 = vst [vmem:[#allocation2 + $0x40] sm:$0xff] %v613
    %646 = vst [vmem:[#allocation2 + $0x48] sm:$0xff] %v614
    %647 = vst [vmem:[#allocation2 + $0x50] sm:$0xff] %v615
    %648 = vst [vmem:[#allocation2 + $0x58] sm:$0xff] %v616
    %649 = vst [vmem:[#allocation2 + $0x60] sm:$0xff] %v617
    %650 = vst [vmem:[#allocation2 + $0x68] sm:$0xff] %v618
    %651 = vst [vmem:[#allocation2 + $0x70] sm:$0xff] %v619
    %652 = vst [vmem:[#allocation2 + $0x78] sm:$0xff] %v620
    %653 = vst [vmem:[#allocation2 + $0x80] sm:$0xff] %v621
    %654 = vst [vmem:[#allocation2 + $0x88] sm:$0xff] %v622
    %655 = vst [vmem:[#allocation2 + $0x90] sm:$0xff] %v623
    %656 = vst [vmem:[#allocation2 + $0x98] sm:$0xff] %v624
    %657 = vst [vmem:[#allocation2 + $0xa0] sm:$0xff] %v625
    %658 = vst [vmem:[#allocation2 + $0xa8] sm:$0xff] %v626
    %659 = vst [vmem:[#allocation2 + $0xb0] sm:$0xff] %v627
    %660 = vst [vmem:[#allocation2 + $0xb8] sm:$0xff] %v628
    %661 = vst [vmem:[#allocation2 + $0xc0] sm:$0xff] %v629
    %662 = vst [vmem:[#allocation2 + $0xc8] sm:$0xff] %v630
    %663 = vst [vmem:[#allocation2 + $0xd0] sm:$0xff] %v631
    %664 = vst [vmem:[#allocation2 + $0xd8] sm:$0xff] %v632
    %665 = vst [vmem:[#allocation2 + $0xe0] sm:$0xff] %v633
    %666 = vst [vmem:[#allocation2 + $0xe8] sm:$0xff] %v634
    %667 = vst [vmem:[#allocation2 + $0xf0] sm:$0xff] %v635
    %668 = vst [vmem:[#allocation2 + $0xf8] sm:$0xff] %v636
    // Predicated region
    $region22: #{propagate_and_accumulate.1} parent=1 // pred_check
      %p669 = pneg %p34
    $region23: #{propagate_and_accumulate.1} parent=1 // pred_check_branch
      %671 = sbr.rel (%p669) target = $region25
    $region24: #{propagate_and_accumulate.1} parent=1 // pred_region
      %v672 = vld [vmem:[#allocation2] sm:$0xff]
      %v673 = vld [vmem:[#allocation2 + $0x8] sm:$0xff]
      %v674 = vld [vmem:[#allocation2 + $0x10] sm:$0xff]
      %v675 = vld [vmem:[#allocation2 + $0x18] sm:$0xff]
      %v676 = vld [vmem:[#allocation2 + $0x20] sm:$0xff]
      %v677 = vld [vmem:[#allocation2 + $0x28] sm:$0xff]
      %v678 = vld [vmem:[#allocation2 + $0x30] sm:$0xff]
      %v679 = vld [vmem:[#allocation2 + $0x38] sm:$0xff]
      %v680 = vld [vmem:[#allocation2 + $0x40] sm:$0xff]
      %v681 = vld [vmem:[#allocation2 + $0x48] sm:$0xff]
      %v682 = vld [vmem:[#allocation2 + $0x50] sm:$0xff]
      %v683 = vld [vmem:[#allocation2 + $0x58] sm:$0xff]
      %v684 = vld [vmem:[#allocation2 + $0x60] sm:$0xff]
      %v685 = vld [vmem:[#allocation2 + $0x68] sm:$0xff]
      %v686 = vld [vmem:[#allocation2 + $0x70] sm:$0xff]
      %v687 = vld [vmem:[#allocation2 + $0x78] sm:$0xff]
      %v688 = vld [vmem:[#allocation2 + $0x80] sm:$0xff]
      %v689 = vld [vmem:[#allocation2 + $0x88] sm:$0xff]
      %v690 = vld [vmem:[#allocation2 + $0x90] sm:$0xff]
      %v691 = vld [vmem:[#allocation2 + $0x98] sm:$0xff]
      %v692 = vld [vmem:[#allocation2 + $0xa0] sm:$0xff]
      %v693 = vld [vmem:[#allocation2 + $0xa8] sm:$0xff]
      %v694 = vld [vmem:[#allocation2 + $0xb0] sm:$0xff]
      %v695 = vld [vmem:[#allocation2 + $0xb8] sm:$0xff]
      %v696 = vld [vmem:[#allocation2 + $0xc0] sm:$0xff]
      %v697 = vld [vmem:[#allocation2 + $0xc8] sm:$0xff]
      %v698 = vld [vmem:[#allocation2 + $0xd0] sm:$0xff]
      %v699 = vld [vmem:[#allocation2 + $0xd8] sm:$0xff]
      %v700 = vld [vmem:[#allocation2 + $0xe0] sm:$0xff]
      %v701 = vld [vmem:[#allocation2 + $0xe8] sm:$0xff]
      %v702 = vld [vmem:[#allocation2 + $0xf0] sm:$0xff]
      %v703 = vld [vmem:[#allocation2 + $0xf8] sm:$0xff]
      %v704 = vpack.c.bf16 %v672, %v672
      %v705 = vpack.c.bf16 %v673, %v673
      %v706 = vpack.c.bf16 %v674, %v674
      %v707 = vpack.c.bf16 %v675, %v675
      %v708 = vpack.c.bf16 %v676, %v676
      %v709 = vpack.c.bf16 %v677, %v677
      %v710 = vpack.c.bf16 %v678, %v678
      %v711 = vpack.c.bf16 %v679, %v679
      %v712 = vpack.c.bf16 %v680, %v680
      %v713 = vpack.c.bf16 %v681, %v681
      %v714 = vpack.c.bf16 %v682, %v682
      %v715 = vpack.c.bf16 %v683, %v683
      %v716 = vpack.c.bf16 %v684, %v684
      %v717 = vpack.c.bf16 %v685, %v685
      %v718 = vpack.c.bf16 %v686, %v686
      %v719 = vpack.c.bf16 %v687, %v687
      %v720 = vpack.c.bf16 %v688, %v688
      %v721 = vpack.c.bf16 %v689, %v689
      %v722 = vpack.c.bf16 %v690, %v690
      %v723 = vpack.c.bf16 %v691, %v691
      %v724 = vpack.c.bf16 %v692, %v692
      %v725 = vpack.c.bf16 %v693, %v693
      %v726 = vpack.c.bf16 %v694, %v694
      %v727 = vpack.c.bf16 %v695, %v695
      %v728 = vpack.c.bf16 %v696, %v696
      %v729 = vpack.c.bf16 %v697, %v697
      %v730 = vpack.c.bf16 %v698, %v698
      %v731 = vpack.c.bf16 %v699, %v699
      %v732 = vpack.c.bf16 %v700, %v700
      %v733 = vpack.c.bf16 %v701, %v701
      %v734 = vpack.c.bf16 %v702, %v702
      %v735 = vpack.c.bf16 %v703, %v703
      %736 = vst [vmem:[#allocation6] sm:$0xf] %v704
      %737 = vst [vmem:[#allocation6 + $0x4] sm:$0xf] %v705
      %738 = vst [vmem:[#allocation6 + $0x8] sm:$0xf] %v706
      %739 = vst [vmem:[#allocation6 + $0xc] sm:$0xf] %v707
      %740 = vst [vmem:[#allocation6 + $0x10] sm:$0xf] %v708
      %741 = vst [vmem:[#allocation6 + $0x14] sm:$0xf] %v709
      %742 = vst [vmem:[#allocation6 + $0x18] sm:$0xf] %v710
      %743 = vst [vmem:[#allocation6 + $0x1c] sm:$0xf] %v711
      %744 = vst [vmem:[#allocation6 + $0x20] sm:$0xf] %v712
      %745 = vst [vmem:[#allocation6 + $0x24] sm:$0xf] %v713
      %746 = vst [vmem:[#allocation6 + $0x28] sm:$0xf] %v714
      %747 = vst [vmem:[#allocation6 + $0x2c] sm:$0xf] %v715
      %748 = vst [vmem:[#allocation6 + $0x30] sm:$0xf] %v716
      %749 = vst [vmem:[#allocation6 + $0x34] sm:$0xf] %v717
      %750 = vst [vmem:[#allocation6 + $0x38] sm:$0xf] %v718
      %751 = vst [vmem:[#allocation6 + $0x3c] sm:$0xf] %v719
      %752 = vst [vmem:[#allocation6 + $0x40] sm:$0xf] %v720
      %753 = vst [vmem:[#allocation6 + $0x44] sm:$0xf] %v721
      %754 = vst [vmem:[#allocation6 + $0x48] sm:$0xf] %v722
      %755 = vst [vmem:[#allocation6 + $0x4c] sm:$0xf] %v723
      %756 = vst [vmem:[#allocation6 + $0x50] sm:$0xf] %v724
      %757 = vst [vmem:[#allocation6 + $0x54] sm:$0xf] %v725
      %758 = vst [vmem:[#allocation6 + $0x58] sm:$0xf] %v726
      %759 = vst [vmem:[#allocation6 + $0x5c] sm:$0xf] %v727
      %760 = vst [vmem:[#allocation6 + $0x60] sm:$0xf] %v728
      %761 = vst [vmem:[#allocation6 + $0x64] sm:$0xf] %v729
      %762 = vst [vmem:[#allocation6 + $0x68] sm:$0xf] %v730
      %763 = vst [vmem:[#allocation6 + $0x6c] sm:$0xf] %v731
      %764 = vst [vmem:[#allocation6 + $0x70] sm:$0xf] %v732
      %765 = vst [vmem:[#allocation6 + $0x74] sm:$0xf] %v733
      %766 = vst [vmem:[#allocation6 + $0x78] sm:$0xf] %v734
      %767 = vst [vmem:[#allocation6 + $0x7c] sm:$0xf] %v735
      %v768 = vld [vmem:[#allocation3] sm:$0xff]
      %v769 = vld [vmem:[#allocation3 + $0x8] sm:$0xff]
      %v770 = vld [vmem:[#allocation3 + $0x10] sm:$0xff]
      %v771 = vld [vmem:[#allocation3 + $0x18] sm:$0xff]
      %v772 = vld [vmem:[#allocation3 + $0x20] sm:$0xff]
      %v773 = vld [vmem:[#allocation3 + $0x28] sm:$0xff]
      %v774 = vld [vmem:[#allocation3 + $0x30] sm:$0xff]
      %v775 = vld [vmem:[#allocation3 + $0x38] sm:$0xff]
      %v776 = vld [vmem:[#allocation3 + $0x40] sm:$0xff]
      %v777 = vld [vmem:[#allocation3 + $0x48] sm:$0xff]
      %v778 = vld [vmem:[#allocation3 + $0x50] sm:$0xff]
      %v779 = vld [vmem:[#allocation3 + $0x58] sm:$0xff]
      %v780 = vld [vmem:[#allocation3 + $0x60] sm:$0xff]
      %v781 = vld [vmem:[#allocation3 + $0x68] sm:$0xff]
      %v782 = vld [vmem:[#allocation3 + $0x70] sm:$0xff]
      %v783 = vld [vmem:[#allocation3 + $0x78] sm:$0xff]
      %v784 = vld [vmem:[#allocation3 + $0x80] sm:$0xff]
      %v785 = vld [vmem:[#allocation3 + $0x88] sm:$0xff]
      %v786 = vld [vmem:[#allocation3 + $0x90] sm:$0xff]
      %v787 = vld [vmem:[#allocation3 + $0x98] sm:$0xff]
      %v788 = vld [vmem:[#allocation3 + $0xa0] sm:$0xff]
      %v789 = vld [vmem:[#allocation3 + $0xa8] sm:$0xff]
      %v790 = vld [vmem:[#allocation3 + $0xb0] sm:$0xff]
      %v791 = vld [vmem:[#allocation3 + $0xb8] sm:$0xff]
      %v792 = vld [vmem:[#allocation3 + $0xc0] sm:$0xff]
      %v793 = vld [vmem:[#allocation3 + $0xc8] sm:$0xff]
      %v794 = vld [vmem:[#allocation3 + $0xd0] sm:$0xff]
      %v795 = vld [vmem:[#allocation3 + $0xd8] sm:$0xff]
      %v796 = vld [vmem:[#allocation3 + $0xe0] sm:$0xff]
      %v797 = vld [vmem:[#allocation3 + $0xe8] sm:$0xff]
      %v798 = vld [vmem:[#allocation3 + $0xf0] sm:$0xff]
      %v799 = vld [vmem:[#allocation3 + $0xf8] sm:$0xff]
      %v800 = vadd.f32 %v768, %v672
      %v801 = vadd.f32 %v769, %v673
      %v802 = vadd.f32 %v770, %v674
      %v803 = vadd.f32 %v771, %v675
      %v804 = vadd.f32 %v772, %v676
      %v805 = vadd.f32 %v773, %v677
      %v806 = vadd.f32 %v774, %v678
      %v807 = vadd.f32 %v775, %v679
      %v808 = vadd.f32 %v776, %v680
      %v809 = vadd.f32 %v777, %v681
      %v810 = vadd.f32 %v778, %v682
      %v811 = vadd.f32 %v779, %v683
      %v812 = vadd.f32 %v780, %v684
      %v813 = vadd.f32 %v781, %v685
      %v814 = vadd.f32 %v782, %v686
      %v815 = vadd.f32 %v783, %v687
      %v816 = vadd.f32 %v784, %v688
      %v817 = vadd.f32 %v785, %v689
      %v818 = vadd.f32 %v786, %v690
      %v819 = vadd.f32 %v787, %v691
      %v820 = vadd.f32 %v788, %v692
      %v821 = vadd.f32 %v789, %v693
      %v822 = vadd.f32 %v790, %v694
      %v823 = vadd.f32 %v791, %v695
      %v824 = vadd.f32 %v792, %v696
      %v825 = vadd.f32 %v793, %v697
      %v826 = vadd.f32 %v794, %v698
      %v827 = vadd.f32 %v795, %v699
      %v828 = vadd.f32 %v796, %v700
      %v829 = vadd.f32 %v797, %v701
      %v830 = vadd.f32 %v798, %v702
      %v831 = vadd.f32 %v799, %v703
      %832 = vst [vmem:[#allocation7] sm:$0xff] %v800
      %833 = vst [vmem:[#allocation7 + $0x8] sm:$0xff] %v801
      %834 = vst [vmem:[#allocation7 + $0x10] sm:$0xff] %v802
      %835 = vst [vmem:[#allocation7 + $0x18] sm:$0xff] %v803
      %836 = vst [vmem:[#allocation7 + $0x20] sm:$0xff] %v804
      %837 = vst [vmem:[#allocation7 + $0x28] sm:$0xff] %v805
      %838 = vst [vmem:[#allocation7 + $0x30] sm:$0xff] %v806
      %839 = vst [vmem:[#allocation7 + $0x38] sm:$0xff] %v807
      %840 = vst [vmem:[#allocation7 + $0x40] sm:$0xff] %v808
      %841 = vst [vmem:[#allocation7 + $0x48] sm:$0xff] %v809
      %842 = vst [vmem:[#allocation7 + $0x50] sm:$0xff] %v810
      %843 = vst [vmem:[#allocation7 + $0x58] sm:$0xff] %v811
      %844 = vst [vmem:[#allocation7 + $0x60] sm:$0xff] %v812
      %845 = vst [vmem:[#allocation7 + $0x68] sm:$0xff] %v813
      %846 = vst [vmem:[#allocation7 + $0x70] sm:$0xff] %v814
      %847 = vst [vmem:[#allocation7 + $0x78] sm:$0xff] %v815
      %848 = vst [vmem:[#allocation7 + $0x80] sm:$0xff] %v816
      %849 = vst [vmem:[#allocation7 + $0x88] sm:$0xff] %v817
      %850 = vst [vmem:[#allocation7 + $0x90] sm:$0xff] %v818
      %851 = vst [vmem:[#allocation7 + $0x98] sm:$0xff] %v819
      %852 = vst [vmem:[#allocation7 + $0xa0] sm:$0xff] %v820
      %853 = vst [vmem:[#allocation7 + $0xa8] sm:$0xff] %v821
      %854 = vst [vmem:[#allocation7 + $0xb0] sm:$0xff] %v822
      %855 = vst [vmem:[#allocation7 + $0xb8] sm:$0xff] %v823
      %856 = vst [vmem:[#allocation7 + $0xc0] sm:$0xff] %v824
      %857 = vst [vmem:[#allocation7 + $0xc8] sm:$0xff] %v825
      %858 = vst [vmem:[#allocation7 + $0xd0] sm:$0xff] %v826
      %859 = vst [vmem:[#allocation7 + $0xd8] sm:$0xff] %v827
      %860 = vst [vmem:[#allocation7 + $0xe0] sm:$0xff] %v828
      %861 = vst [vmem:[#allocation7 + $0xe8] sm:$0xff] %v829
      %862 = vst [vmem:[#allocation7 + $0xf0] sm:$0xff] %v830
      %863 = vst [vmem:[#allocation7 + $0xf8] sm:$0xff] %v831
    $region25: #{propagate_and_accumulate.1} parent=1 // pred_fallthru
      _
    // Predicated region
    $region26: #{propagate_and_accumulate.1} parent=1 // pred_check
      _
    $region27: #{propagate_and_accumulate.1} parent=1 // pred_check_branch
      %865 = sbr.rel (0) target = $region29
    $region28: #{propagate_and_accumulate.1} parent=1 // pred_region
      %867 = vsyncadd [#allocation5], 0
      %s868 = sshll.u32 [#allocation6], 4
      %s869 = int_to_ptr.vmem [resolvable:$true] %s868
      %s870 = sshll.u32 %s3, 4
      %s871 = int_to_ptr.hbm [resolvable:$true] %s870
      %876 = dma.vmem_to_hbm [thread:$0]  %s869, 2048, %s871, [#allocation5], 64, 64, 4
    $region29: #{propagate_and_accumulate.1} parent=1 // pred_fallthru
      _
    // Predicated region
    $region30: #{propagate_and_accumulate.1} parent=1 // pred_check
      _
    $region31: #{propagate_and_accumulate.1} parent=1 // pred_check_branch
      %878 = sbr.rel (0) target = $region33
    $region32: #{propagate_and_accumulate.1} parent=1 // pred_region
      %880 = vsyncadd [#allocation8], 0
      %s881 = sshll.u32 [#allocation7], 4
      %s882 = int_to_ptr.vmem [resolvable:$true] %s881
      %s883 = sshll.u32 %s4, 4
      %s884 = int_to_ptr.hbm [resolvable:$true] %s883
      %889 = dma.vmem_to_hbm [thread:$0]  %s882, 4096, %s884, [#allocation8], 128, 128, 8
    $region33: #{propagate_and_accumulate.1} parent=1 // pred_fallthru
      _
    // Predicated region
    $region34: #{propagate_and_accumulate.1} parent=1 // pred_check
      _
    $region35: #{propagate_and_accumulate.1} parent=1 // pred_check_branch
      %891 = sbr.rel (0) target = $region37
    $region36: #{propagate_and_accumulate.1} parent=1 // pred_region
      %893 = dma.done [#allocation5], 2048
    $region37: #{propagate_and_accumulate.1} parent=1 // pred_fallthru
      _
    // Predicated region
    $region38: #{propagate_and_accumulate.1} parent=1 // pred_check
      _
    $region39: #{propagate_and_accumulate.1} parent=1 // pred_check_branch
      %895 = sbr.rel (0) target = $region41
    $region40: #{propagate_and_accumulate.1} parent=1 // pred_region
      %897 = dma.done [#allocation8], 4096
    $region41: #{propagate_and_accumulate.1} parent=1 // pred_fallthru
      _
    %898 = vsyncpa [#allocation4], 1
    %899 = vsyncpa [#allocation5], 1
    %900 = vsyncpa [#allocation8], 1

</llo_original>
